<compile_context>
chip_gen: v6e
topology: v6e:2x2x1
jax: 0.10.0
libtpu: 0.0.40
codegen_flags: <defaults>
</compile_context>

<pallas_src>
import jax
import jax.numpy as jnp
from jax.experimental import pallas as pl
from jax.experimental.pallas import tpu as pltpu


def _linear_kernel(x_ref, w_ref, b_ref, o_ref):
    # x_ref: (TILE_B, D), w_ref: (D, C), b_ref: (1, C) f32, o_ref: (TILE_B, C) f32
    acc = jnp.dot(x_ref[...], w_ref[...], preferred_element_type=jnp.float32)
    o_ref[...] = acc + b_ref[...]  # broadcast (1, C) over (TILE_B, C)


def _round_up(v, m):
    return (v + m - 1) // m * m


# Cap keeps the double-buffered, lane-padded tile footprint < ~24 MiB on every
# generation (v7x has only 64 MiB VMEM per TensorCore).
_MAX_TILE_B = 4096


def logistic_regression_forward(x, w_t, b, *, tile_b=_MAX_TILE_B,
                                use_bf16_inputs=False):
    """x: [B, 300], w_t: [300, 4] (transpose of torch weight [4, 300]), b: [4].
    Returns logits [B, 4] f32 (== nn.Linear(300, 4)(x))."""
    B, D = x.shape
    Dw, C = w_t.shape
    assert D == Dw and b.shape == (C,)

    # Tile size: multiple of 8 (sublane), capped, never (much) larger than B.
    tb = min(tile_b, _MAX_TILE_B, _round_up(max(B, 1), 8))
    tb = _round_up(tb, 8)
    grid = (pl.cdiv(B, tb),)  # ragged last block handled by Pallas (no host pad)

    if use_bf16_inputs:
        x = x.astype(jnp.bfloat16)
        w_t = w_t.astype(jnp.bfloat16)
    b2 = b.astype(jnp.float32).reshape(1, C)

    x_item = jnp.dtype(x.dtype).itemsize
    w_item = jnp.dtype(w_t.dtype).itemsize

    # Scoped-VMEM budget from the actual (lane/sublane padded, double-buffered)
    # tile footprint; raises v5e's 16 MiB default, stays well under v7x's 64 MiB.
    vmem_bytes = (
        2 * tb * _round_up(D, 128) * x_item            # X tiles
        + 2 * tb * _round_up(C, 128) * 4               # output tiles (f32)
        + 2 * _round_up(D, 8) * _round_up(C, 128) * w_item  # resident W_t
        + (1 << 20)                                    # bias + slack
    )
    vmem_limit = int(max(32 << 20, min(vmem_bytes + (8 << 20), 48 << 20)))

    cost = pl.CostEstimate(
        flops=2 * B * D * C,
        transcendentals=0,
        bytes_accessed=B * D * x_item + D * C * w_item + C * 4 + B * C * 4,
    )

    return pl.pallas_call(
        _linear_kernel,
        out_shape=jax.ShapeDtypeStruct((B, C), jnp.float32),
        grid=grid,
        in_specs=[
            # X: batch-tiled, streamed (auto double-buffered) across the grid.
            pl.BlockSpec((tb, D), lambda i: (i, 0)),
            # W_t: constant block index -> resident in VMEM for all steps.
            pl.BlockSpec((D, C), lambda i: (0, 0)),
            # bias: constant block index -> resident.
            pl.BlockSpec((1, C), lambda i: (0, 0)),
        ],
        out_specs=pl.BlockSpec((tb, C), lambda i: (i, 0)),
        compiler_params=pltpu.CompilerParams(
            dimension_semantics=(pltpu.PARALLEL,),
            vmem_limit_bytes=vmem_limit,
        ),
        cost_estimate=cost,
    )(x, w_t, b2)


if __name__ == "__main__":
    key = jax.random.PRNGKey(0)
    k_x, k_w, k_b = jax.random.split(key, 3)

    # Linear(300, 4).  Batch deliberately not a multiple of 8 / of the tile so
    # the ragged-last-block path (no host-side padding) is exercised.
    B, D, C = 132, 300, 4

    x = jax.random.normal(k_x, (B, D), dtype=jnp.float32)
    # Parameter init mimicking torch.nn.Linear default
    # (uniform in [-1/sqrt(in_features), 1/sqrt(in_features)]).
    bound = 1.0 / jnp.sqrt(jnp.float32(D))
    w = jax.random.uniform(k_w, (C, D), dtype=jnp.float32, minval=-bound, maxval=bound)
    b = jax.random.uniform(k_b, (C,), dtype=jnp.float32, minval=-bound, maxval=bound)

    w_t = w.T  # [300, 4] so the kernel is a plain X @ W_t
    ref = x @ w_t + b[None, :]

    # Default config: single tile covering the ragged batch, no padding copy.
    out = logistic_regression_forward(x, w_t, b)
    jax.block_until_ready(out)
    assert out.shape == (B, C)
    assert jnp.allclose(out, ref, atol=1e-5, rtol=1e-5)

    # Multi-step ragged grid (tile 64 -> grid of 3, last block partially OOB).
    out2 = logistic_regression_forward(x, w_t, b, tile_b=64)
    jax.block_until_ready(out2)
    assert jnp.allclose(out2, ref, atol=1e-5, rtol=1e-5)

    # Optional bf16-input path (halves HBM traffic; f32 accumulation/output).
    out3 = logistic_regression_forward(x, w_t, b, use_bf16_inputs=True)
    jax.block_until_ready(out3)
    assert jnp.allclose(out3, ref, atol=5e-2, rtol=5e-2)

    print("KERNEL_OK")
</pallas_src>

<mosaic_0001>
module attributes {stable_mosaic.version = 11 : i64} {
  func.func @_linear_kernel(%arg0: i32, %arg1: memref<136x300xf32, #tpu.memory_space<vmem>>, %arg2: memref<300x4xf32, #tpu.memory_space<vmem>>, %arg3: memref<1x4xf32, #tpu.memory_space<vmem>>, %arg4: memref<136x4xf32, #tpu.memory_space<vmem>>) attributes {dimension_semantics = [#tpu.dimension_semantics<parallel>], iteration_bounds = array<i64: 1>, scalar_prefetch = 0 : i64, scratch_operands = 0 : i64, tpu.core_type = #tpu.core_type<tc>, window_params = [{transform_indices = @transform_0, window_bounds = array<i64: 136, 300>}, {pipeline_mode = #tpu.pipeline_mode<synchronous>, transform_indices = @transform_1, window_bounds = array<i64: 300, 4>}, {pipeline_mode = #tpu.pipeline_mode<synchronous>, transform_indices = @transform_2, window_bounds = array<i64: 1, 4>}, {transform_indices = @transform_3, window_bounds = array<i64: 136, 4>}]} {
    %c0 = arith.constant 0 : index
    %c0_0 = arith.constant 0 : index
    %0 = vector.load %arg1[%c0, %c0_0] : memref<136x300xf32, #tpu.memory_space<vmem>>, vector<136x300xf32>
    %c0_1 = arith.constant 0 : index
    %c0_2 = arith.constant 0 : index
    %1 = vector.load %arg2[%c0_1, %c0_2] : memref<300x4xf32, #tpu.memory_space<vmem>>, vector<300x4xf32>
    %cst = arith.constant dense<0.000000e+00> : vector<136x4xf32>
    %2 = tpu.matmul %0, %1, %cst {dimension_numbers = #tpu.dot_dimension_numbers<[1], [0], [0], [1], [0, 0, 1, 1], [], []>} : vector<136x300xf32>, vector<300x4xf32>, vector<136x4xf32> -> vector<136x4xf32>
    %c0_3 = arith.constant 0 : index
    %c0_4 = arith.constant 0 : index
    %3 = vector.load %arg3[%c0_3, %c0_4] : memref<1x4xf32, #tpu.memory_space<vmem>>, vector<1x4xf32>
    %4 = vector.broadcast %3 : vector<1x4xf32> to vector<136x4xf32>
    %5 = arith.addf %2, %4 : vector<136x4xf32>
    %c0_5 = arith.constant 0 : index
    %c0_6 = arith.constant 0 : index
    %6 = vector.load %arg4[%c0_5, %c0_6] : memref<136x4xf32, #tpu.memory_space<vmem>>, vector<136x4xf32>
    tpu.vector_store %arg4[%c0_5, %c0_6], %5 {strides = array<i32>} : memref<136x4xf32, #tpu.memory_space<vmem>>, vector<136x4xf32>,
    return
  }
  func.func @transform_0(%arg0: i32) -> (i32, i32) {
    %c0_i32 = arith.constant 0 : i32
    %c0_i32_0 = arith.constant 0 : i32
    return %arg0, %c0_i32 : i32, i32
  }
  func.func @transform_1(%arg0: i32) -> (i32, i32) {
    %c0_i32 = arith.constant 0 : i32
    %c0_i32_0 = arith.constant 0 : i32
    %c0_i32_1 = arith.constant 0 : i32
    return %c0_i32, %c0_i32_0 : i32, i32
  }
  func.func @transform_2(%arg0: i32) -> (i32, i32) {
    %c0_i32 = arith.constant 0 : i32
    %c0_i32_0 = arith.constant 0 : i32
    %c0_i32_1 = arith.constant 0 : i32
    return %c0_i32, %c0_i32_0 : i32, i32
  }
  func.func @transform_3(%arg0: i32) -> (i32, i32) {
    %c0_i32 = arith.constant 0 : i32
    %c0_i32_0 = arith.constant 0 : i32
    return %arg0, %c0_i32 : i32, i32
  }
}

</mosaic_0001>

<llo_original>
// kernel: tpu_custom_call.1
$region0: #{tpu_custom_call.1}
  #allocation0 [shape = 'u32[]', space=smem, size = 0x4, offset = 0x4, fixed_abs, tag = 'smem constant byte address 0x4 - core index']
  #allocation1 [shape = 'u32[144,128]{1,0:T(1,128)}', space=vmem, size = 0x12000, scoped, tag = 'internal scratch']
  %s0 = inlined_call_operand.hbm [shape: f32[132,300], index: 0, kind: input, shape index: {}]
  %s1 = inlined_call_operand.vmem [shape: f32[300,4], index: 1, kind: input, shape index: {}]
  %s2 = inlined_call_operand.vmem [shape: f32[1,4], index: 2, kind: input, shape index: {}]
  %s3 = inlined_call_operand.vmem [shape: f32[132,4], index: 3, kind: output, shape index: {}]
  %s4 = sld [smem:[#allocation0]]
  $region26: #{tpu_custom_call.1} parent=0
    _
  %s6 = ssub.s32 1, %s4
  %s7 = scalar_select 0, %s6, %s4
  $region1: #{tpu_custom_call.1} parent=0
    #allocation2 [shape = 'u8[208896]{0}', space=vmem, size = 0x33000, scoped, tag = 'input window, operand 0, single buffered']
    #allocation3 [shape = 's32[1]{0}', space=sflag, size = 0x4, scoped, tag = 'scoped memory for tpu_custom_call.1']
    %8 = vsyncpa [#allocation3], 0
    // Predicated region
    $region2: #{tpu_custom_call.1} parent=1 // pred_check
      _
    $region3: #{tpu_custom_call.1} parent=1 // pred_check_branch
      %10 = sbr.rel (0) target = $region5
    $region4: #{tpu_custom_call.1} parent=1 // pred_region
      %s12 = ssub.s32 6528, 6528
      %13 = vsyncadd [#allocation3], %s12
      %s14 = sshll.u32 [#allocation2], 4
      %s15 = int_to_ptr.vmem [resolvable:$true] %s14
      %20 = dma.hbm_to_vmem [thread:$0]  %s0, 6528, %s15, [#allocation3], 384, 384, 24
    $region5: #{tpu_custom_call.1} parent=1 // pred_fallthru
      _
    // Predicated region
    $region6: #{tpu_custom_call.1} parent=1 // pred_check
      _
    $region7: #{tpu_custom_call.1} parent=1 // pred_check_branch
      %22 = sbr.rel (0) target = $region9
    $region8: #{tpu_custom_call.1} parent=1 // pred_region
      _
    $region9: #{tpu_custom_call.1} parent=1 // pred_fallthru
      _
    // Predicated region
    $region10: #{tpu_custom_call.1} parent=1 // pred_check
      _
    $region11: #{tpu_custom_call.1} parent=1 // pred_check_branch
      %24 = sbr.rel (0) target = $region13
    $region12: #{tpu_custom_call.1} parent=1 // pred_region
      _
    $region13: #{tpu_custom_call.1} parent=1 // pred_fallthru
      _
    // Predicated region
    $region14: #{tpu_custom_call.1} parent=1 // pred_check
      _
    $region15: #{tpu_custom_call.1} parent=1 // pred_check_branch
      %26 = sbr.rel (0) target = $region17
    $region16: #{tpu_custom_call.1} parent=1 // pred_region
      %27 = dma.done [#allocation3], 6528
    $region17: #{tpu_custom_call.1} parent=1 // pred_fallthru
      _
    %v28 = vld [vmem:[#allocation2] sm:$0xff]
    %v29 = vld [vmem:[#allocation2 + $0x8] sm:$0xff]
    %v30 = vld [vmem:[#allocation2 + $0x10] sm:$0xff]
    %v31 = vld [vmem:[#allocation2 + $0x18] sm:$0xff]
    %v32 = vld [vmem:[#allocation2 + $0x20] sm:$0xff]
    %v33 = vld [vmem:[#allocation2 + $0x28] sm:$0xff]
    %v34 = vld [vmem:[#allocation2 + $0x30] sm:$0xff]
    %v35 = vld [vmem:[#allocation2 + $0x38] sm:$0xff]
    %v36 = vld [vmem:[#allocation2 + $0x40] sm:$0xff]
    %v37 = vld [vmem:[#allocation2 + $0x48] sm:$0xff]
    %v38 = vld [vmem:[#allocation2 + $0x50] sm:$0xff]
    %v39 = vld [vmem:[#allocation2 + $0x58] sm:$0xff]
    %v40 = vld [vmem:[#allocation2 + $0x60] sm:$0xff]
    %v41 = vld [vmem:[#allocation2 + $0x68] sm:$0xff]
    %v42 = vld [vmem:[#allocation2 + $0x70] sm:$0xff]
    %v43 = vld [vmem:[#allocation2 + $0x78] sm:$0xff]
    %v44 = vld [vmem:[#allocation2 + $0x80] sm:$0xff]
    %v45 = vld [vmem:[#allocation2 + $0x88] sm:$0xff]
    %v46 = vld [vmem:[#allocation2 + $0x90] sm:$0xff]
    %v47 = vld [vmem:[#allocation2 + $0x98] sm:$0xff]
    %v48 = vld [vmem:[#allocation2 + $0xa0] sm:$0xff]
    %v49 = vld [vmem:[#allocation2 + $0xa8] sm:$0xff]
    %v50 = vld [vmem:[#allocation2 + $0xb0] sm:$0xff]
    %v51 = vld [vmem:[#allocation2 + $0xb8] sm:$0xff]
    %v52 = vld [vmem:[#allocation2 + $0xc0] sm:$0xff]
    %v53 = vld [vmem:[#allocation2 + $0xc8] sm:$0xff]
    %v54 = vld [vmem:[#allocation2 + $0xd0] sm:$0xff]
    %v55 = vld [vmem:[#allocation2 + $0xd8] sm:$0xff]
    %v56 = vld [vmem:[#allocation2 + $0xe0] sm:$0xff]
    %v57 = vld [vmem:[#allocation2 + $0xe8] sm:$0xff]
    %v58 = vld [vmem:[#allocation2 + $0xf0] sm:$0xff]
    %v59 = vld [vmem:[#allocation2 + $0xf8] sm:$0xff]
    %v60 = vld [vmem:[#allocation2 + $0x100] sm:$0xff]
    %v61 = vld [vmem:[#allocation2 + $0x108] sm:$0xff]
    %v62 = vld [vmem:[#allocation2 + $0x110] sm:$0xff]
    %v63 = vld [vmem:[#allocation2 + $0x118] sm:$0xff]
    %v64 = vld [vmem:[#allocation2 + $0x120] sm:$0xff]
    %v65 = vld [vmem:[#allocation2 + $0x128] sm:$0xff]
    %v66 = vld [vmem:[#allocation2 + $0x130] sm:$0xff]
    %v67 = vld [vmem:[#allocation2 + $0x138] sm:$0xff]
    %v68 = vld [vmem:[#allocation2 + $0x140] sm:$0xff]
    %v69 = vld [vmem:[#allocation2 + $0x148] sm:$0xff]
    %v70 = vld [vmem:[#allocation2 + $0x150] sm:$0xff]
    %v71 = vld [vmem:[#allocation2 + $0x158] sm:$0xff]
    %v72 = vld [vmem:[#allocation2 + $0x160] sm:$0xff]
    %v73 = vld [vmem:[#allocation2 + $0x168] sm:$0xff]
    %v74 = vld [vmem:[#allocation2 + $0x170] sm:$0xff]
    %v75 = vld [vmem:[#allocation2 + $0x178] sm:$0xff]
    %v76 = vld [vmem:[#allocation2 + $0x180] sm:$0xff]
    %v77 = vld [vmem:[#allocation2 + $0x188] sm:$0xff]
    %v78 = vld [vmem:[#allocation2 + $0x190] sm:$0xff]
    %v79 = vld [vmem:[%s1] sm:$0xff]
    %v80 = vld [vmem:[%s1 + $0x8] sm:$0xff]
    %v81 = vld [vmem:[%s1 + $0x10] sm:$0xff]
    %v82 = vld [vmem:[%s1 + $0x18] sm:$0xff]
    %v83 = vld [vmem:[%s1 + $0x20] sm:$0xff]
    %v84 = vld [vmem:[%s1 + $0x28] sm:$0xff]
    %v85 = vld [vmem:[%s1 + $0x30] sm:$0xff]
    %v86 = vld [vmem:[%s1 + $0x38] sm:$0xff]
    %v87 = vld [vmem:[%s1 + $0x40] sm:$0xff]
    %v88 = vld [vmem:[%s1 + $0x48] sm:$0xff]
    %v89 = vld [vmem:[%s1 + $0x50] sm:$0xff]
    %v90 = vld [vmem:[%s1 + $0x58] sm:$0xff]
    %v91 = vld [vmem:[%s1 + $0x60] sm:$0xff]
    %v92 = vld [vmem:[%s1 + $0x68] sm:$0xff]
    %v93 = vld [vmem:[%s1 + $0x70] sm:$0xff]
    %v94 = vld [vmem:[%s1 + $0x78] sm:$0xff]
    %v95 = vld [vmem:[%s1 + $0x80] sm:$0xff]
    %v96 = vld [vmem:[%s1 + $0x88] sm:$0xff]
    %v97 = vld [vmem:[%s1 + $0x90] sm:$0xff]
    %v98 = vld [vmem:[%s1 + $0x98] sm:$0xff]
    %v99 = vld [vmem:[%s1 + $0xa0] sm:$0xff]
    %v100 = vld [vmem:[%s1 + $0xa8] sm:$0xff]
    %v101 = vld [vmem:[%s1 + $0xb0] sm:$0xff]
    %v102 = vld [vmem:[%s1 + $0xb8] sm:$0xff]
    %v103 = vld [vmem:[%s1 + $0xc0] sm:$0xff]
    %v104 = vld [vmem:[%s1 + $0xc8] sm:$0xff]
    %v105 = vld [vmem:[%s1 + $0xd0] sm:$0xff]
    %v106 = vld [vmem:[%s1 + $0xd8] sm:$0xff]
    %v107 = vld [vmem:[%s1 + $0xe0] sm:$0xff]
    %v108 = vld [vmem:[%s1 + $0xe8] sm:$0xff]
    %v109 = vld [vmem:[%s1 + $0xf0] sm:$0xff]
    %v110 = vld [vmem:[%s1 + $0xf8] sm:$0xff]
    %v111 = vld [vmem:[%s1 + $0x100] sm:$0xff]
    %v112 = vld [vmem:[%s1 + $0x108] sm:$0xff]
    %v113 = vld [vmem:[%s1 + $0x110] sm:$0xff]
    %v114 = vld [vmem:[%s1 + $0x118] sm:$0xff]
    %v115 = vld [vmem:[%s1 + $0x120] sm:$0xff]
    %v116 = vld [vmem:[%s1 + $0x128] sm:$0xf]
    %v117 = vld [vmem:[%s2] sm:$0x1]
    %v119 = vlaneseq
    %v120 = vshrl.u32 %v119, 7
    %v121 = vsub.s32 0, %v120
    %v122 = vrot.slane %v117, %v121
    %vm124 = vcmask 359424
    %v126 = vsel %vm124, %v30, 0
    %v129 = vsel %vm124, %v33, 0
    %v132 = vsel %vm124, %v36, 0
    %v135 = vsel %vm124, %v39, 0
    %v138 = vsel %vm124, %v42, 0
    %v141 = vsel %vm124, %v45, 0
    %v144 = vsel %vm124, %v48, 0
    %v147 = vsel %vm124, %v51, 0
    %v150 = vsel %vm124, %v54, 0
    %v153 = vsel %vm124, %v57, 0
    %v156 = vsel %vm124, %v60, 0
    %v159 = vsel %vm124, %v63, 0
    %v162 = vsel %vm124, %v66, 0
    %v165 = vsel %vm124, %v69, 0
    %v168 = vsel %vm124, %v72, 0
    %v171 = vsel %vm124, %v75, 0
    %v174 = vsel %vm124, %v78, 0
    %vm176 = vcmask 1043456
    %v178 = vsel %vm176, %v116, 0
    %180 = vmatprep.subr.mxu0 0.0
    %181 = vmatpush1.msra.mxu0 %v94
    %182 = vmatprep.subr.mxu0 0.0
    %183 = vmatpush1.msra.mxu0 %v93
    %184 = vmatprep.subr.mxu0 0.0
    %185 = vmatpush1.msra.mxu0 %v92
    %186 = vmatprep.subr.mxu0 0.0
    %187 = vmatpush1.msra.mxu0 %v91
    %188 = vmatprep.subr.mxu0 0.0
    %189 = vmatpush1.msra.mxu0 %v90
    %190 = vmatprep.subr.mxu0 0.0
    %191 = vmatpush1.msra.mxu0 %v89
    %192 = vmatprep.subr.mxu0 0.0
    %193 = vmatpush1.msra.mxu0 %v88
    %194 = vmatprep.subr.mxu0 0.0
    %195 = vmatpush1.msra.mxu0 %v87
    %196 = vmatprep.subr.mxu0 0.0
    %197 = vmatpush1.msra.mxu0 %v86
    %198 = vmatprep.subr.mxu0 0.0
    %199 = vmatpush1.msra.mxu0 %v85
    %200 = vmatprep.subr.mxu0 0.0
    %201 = vmatpush1.msra.mxu0 %v84
    %202 = vmatprep.subr.mxu0 0.0
    %203 = vmatpush1.msra.mxu0 %v83
    %204 = vmatprep.subr.mxu0 0.0
    %205 = vmatpush1.msra.mxu0 %v82
    %206 = vmatprep.subr.mxu0 0.0
    %207 = vmatpush1.msra.mxu0 %v81
    %208 = vmatprep.subr.mxu0 0.0
    %209 = vmatpush1.msra.mxu0 %v80
    %210 = vmatprep.subr.mxu0 0.0
    %211 = vmatpush1.msra.mxu0 %v79
    %212 = vmatprep.subr.mxu0 0.0
    %213 = vmatpush2.msra.mxu0 %v110
    %214 = vmatprep.subr.mxu0 0.0
    %215 = vmatpush2.msra.mxu0 %v109
    %216 = vmatprep.subr.mxu0 0.0
    %217 = vmatpush2.msra.mxu0 %v108
    %218 = vmatprep.subr.mxu0 0.0
    %219 = vmatpush2.msra.mxu0 %v107
    %220 = vmatprep.subr.mxu0 0.0
    %221 = vmatpush2.msra.mxu0 %v106
    %222 = vmatprep.subr.mxu0 0.0
    %223 = vmatpush2.msra.mxu0 %v105
    %224 = vmatprep.subr.mxu0 0.0
    %225 = vmatpush2.msra.mxu0 %v104
    %226 = vmatprep.subr.mxu0 0.0
    %227 = vmatpush2.msra.mxu0 %v103
    %228 = vmatprep.subr.mxu0 0.0
    %229 = vmatpush2.msra.mxu0 %v102
    %230 = vmatprep.subr.mxu0 0.0
    %231 = vmatpush2.msra.mxu0 %v101
    %232 = vmatprep.subr.mxu0 0.0
    %233 = vmatpush2.msra.mxu0 %v100
    %234 = vmatprep.subr.mxu0 0.0
    %235 = vmatpush2.msra.mxu0 %v99
    %236 = vmatprep.subr.mxu0 0.0
    %237 = vmatpush2.msra.mxu0 %v98
    %238 = vmatprep.subr.mxu0 0.0
    %239 = vmatpush2.msra.mxu0 %v97
    %240 = vmatprep.subr.mxu0 0.0
    %241 = vmatpush2.msra.mxu0 %v96
    %242 = vmatprep.subr.mxu0 0.0
    %243 = vmatpush2.msra.mxu0 %v95
    %244 = vmatprep.mubr.f32.mxu0 %v29
    %245 = vmatmul.mubr.f32.gmra.mxu0 %v28
    %v246 = vpop.f32.mrf.mxu0
    %v247 = vadd.f32 %v122, %v246
    %v248 = vpop.f32.mrf.mxu0
    %249 = vmatprep.mubr.f32.mxu0 %v32
    %250 = vmatmul.mubr.f32.gmra.mxu0 %v31
    %v251 = vpop.f32.mrf.mxu0
    %v252 = vadd.f32 %v122, %v251
    %v253 = vpop.f32.mrf.mxu0
    %254 = vmatprep.mubr.f32.mxu0 %v35
    %255 = vmatmul.mubr.f32.gmra.mxu0 %v34
    %v256 = vpop.f32.mrf.mxu0
    %v257 = vadd.f32 %v122, %v256
    %v258 = vpop.f32.mrf.mxu0
    %259 = vmatprep.mubr.f32.mxu0 %v38
    %260 = vmatmul.mubr.f32.gmra.mxu0 %v37
    %v261 = vpop.f32.mrf.mxu0
    %v262 = vadd.f32 %v122, %v261
    %v263 = vpop.f32.mrf.mxu0
    %264 = vmatprep.mubr.f32.mxu0 %v41
    %265 = vmatmul.mubr.f32.gmra.mxu0 %v40
    %v266 = vpop.f32.mrf.mxu0
    %v267 = vadd.f32 %v122, %v266
    %v268 = vpop.f32.mrf.mxu0
    %269 = vmatprep.mubr.f32.mxu0 %v44
    %270 = vmatmul.mubr.f32.gmra.mxu0 %v43
    %v271 = vpop.f32.mrf.mxu0
    %v272 = vadd.f32 %v122, %v271
    %v273 = vpop.f32.mrf.mxu0
    %274 = vmatprep.mubr.f32.mxu0 %v47
    %275 = vmatmul.mubr.f32.gmra.mxu0 %v46
    %v276 = vpop.f32.mrf.mxu0
    %v277 = vadd.f32 %v122, %v276
    %v278 = vpop.f32.mrf.mxu0
    %279 = vmatprep.mubr.f32.mxu0 %v50
    %280 = vmatmul.mubr.f32.gmra.mxu0 %v49
    %v281 = vpop.f32.mrf.mxu0
    %v282 = vadd.f32 %v122, %v281
    %v283 = vpop.f32.mrf.mxu0
    %284 = vmatprep.mubr.f32.mxu0 %v53
    %285 = vmatmul.mubr.f32.gmra.mxu0 %v52
    %v286 = vpop.f32.mrf.mxu0
    %v287 = vadd.f32 %v122, %v286
    %v288 = vpop.f32.mrf.mxu0
    %289 = vmatprep.mubr.f32.mxu0 %v56
    %290 = vmatmul.mubr.f32.gmra.mxu0 %v55
    %v291 = vpop.f32.mrf.mxu0
    %v292 = vadd.f32 %v122, %v291
    %v293 = vpop.f32.mrf.mxu0
    %294 = vmatprep.mubr.f32.mxu0 %v59
    %295 = vmatmul.mubr.f32.gmra.mxu0 %v58
    %v296 = vpop.f32.mrf.mxu0
    %v297 = vadd.f32 %v122, %v296
    %v298 = vpop.f32.mrf.mxu0
    %299 = vmatprep.mubr.f32.mxu0 %v62
    %300 = vmatmul.mubr.f32.gmra.mxu0 %v61
    %v301 = vpop.f32.mrf.mxu0
    %v302 = vadd.f32 %v122, %v301
    %v303 = vpop.f32.mrf.mxu0
    %304 = vmatprep.mubr.f32.mxu0 %v65
    %305 = vmatmul.mubr.f32.gmra.mxu0 %v64
    %v306 = vpop.f32.mrf.mxu0
    %v307 = vadd.f32 %v122, %v306
    %v308 = vpop.f32.mrf.mxu0
    %309 = vmatprep.mubr.f32.mxu0 %v68
    %310 = vmatmul.mubr.f32.gmra.mxu0 %v67
    %v311 = vpop.f32.mrf.mxu0
    %v312 = vadd.f32 %v122, %v311
    %v313 = vpop.f32.mrf.mxu0
    %314 = vmatprep.mubr.f32.mxu0 %v71
    %315 = vmatmul.mubr.f32.gmra.mxu0 %v70
    %v316 = vpop.f32.mrf.mxu0
    %v317 = vadd.f32 %v122, %v316
    %v318 = vpop.f32.mrf.mxu0
    %319 = vmatprep.mubr.f32.mxu0 %v74
    %320 = vmatmul.mubr.f32.gmra.mxu0 %v73
    %v321 = vpop.f32.mrf.mxu0
    %v322 = vadd.f32 %v122, %v321
    %v323 = vpop.f32.mrf.mxu0
    %324 = vmatprep.mubr.f32.mxu0 %v77
    %325 = vmatmul.mubr.f32.gmra.mxu0 %v76
    %v326 = vpop.f32.mrf.mxu0
    %v327 = vadd.f32 %v122, %v326
    %v328 = vpop.f32.mrf.mxu0
    %329 = vdwg.mxu0
    %330 = vmatprep.subr.mxu0 0.0
    %331 = vmatpush1.msra.mxu0 0.0
    %332 = vmatprep.subr.mxu0 0.0
    %333 = vmatpush1.msra.mxu0 0.0
    %334 = vmatprep.subr.mxu0 0.0
    %335 = vmatpush1.msra.mxu0 0.0
    %336 = vmatprep.subr.mxu0 0.0
    %337 = vmatpush1.msra.mxu0 0.0
    %338 = vmatprep.subr.mxu0 0.0
    %339 = vmatpush1.msra.mxu0 0.0
    %340 = vmatprep.subr.mxu0 0.0
    %341 = vmatpush1.msra.mxu0 0.0
    %342 = vmatprep.subr.mxu0 0.0
    %343 = vmatpush1.msra.mxu0 0.0
    %344 = vmatprep.subr.mxu0 0.0
    %345 = vmatpush1.msra.mxu0 0.0
    %346 = vmatprep.subr.mxu0 0.0
    %347 = vmatpush1.msra.mxu0 0.0
    %348 = vmatprep.subr.mxu0 0.0
    %349 = vmatpush1.msra.mxu0 0.0
    %350 = vmatprep.subr.mxu0 0.0
    %351 = vmatpush1.msra.mxu0 %v178
    %352 = vmatprep.subr.mxu0 0.0
    %353 = vmatpush1.msra.mxu0 %v115
    %354 = vmatprep.subr.mxu0 0.0
    %355 = vmatpush1.msra.mxu0 %v114
    %356 = vmatprep.subr.mxu0 0.0
    %357 = vmatpush1.msra.mxu0 %v113
    %358 = vmatprep.subr.mxu0 0.0
    %359 = vmatpush1.msra.mxu0 %v112
    %360 = vmatprep.subr.mxu0 0.0
    %361 = vmatpush1.msra.mxu0 %v111
    %362 = vmatprep.subr.mxu0 0.0
    %363 = vmatpush2.msra.mxu0 0.0
    %364 = vmatprep.subr.mxu0 0.0
    %365 = vmatpush2.msra.mxu0 0.0
    %366 = vmatprep.subr.mxu0 0.0
    %367 = vmatpush2.msra.mxu0 0.0
    %368 = vmatprep.subr.mxu0 0.0
    %369 = vmatpush2.msra.mxu0 0.0
    %370 = vmatprep.subr.mxu0 0.0
    %371 = vmatpush2.msra.mxu0 0.0
    %372 = vmatprep.subr.mxu0 0.0
    %373 = vmatpush2.msra.mxu0 0.0
    %374 = vmatprep.subr.mxu0 0.0
    %375 = vmatpush2.msra.mxu0 0.0
    %376 = vmatprep.subr.mxu0 0.0
    %377 = vmatpush2.msra.mxu0 0.0
    %378 = vmatprep.subr.mxu0 0.0
    %379 = vmatpush2.msra.mxu0 0.0
    %380 = vmatprep.subr.mxu0 0.0
    %381 = vmatpush2.msra.mxu0 0.0
    %382 = vmatprep.subr.mxu0 0.0
    %383 = vmatpush2.msra.mxu0 0.0
    %384 = vmatprep.subr.mxu0 0.0
    %385 = vmatpush2.msra.mxu0 0.0
    %386 = vmatprep.subr.mxu0 0.0
    %387 = vmatpush2.msra.mxu0 0.0
    %388 = vmatprep.subr.mxu0 0.0
    %389 = vmatpush2.msra.mxu0 0.0
    %390 = vmatprep.subr.mxu0 0.0
    %391 = vmatpush2.msra.mxu0 0.0
    %392 = vmatprep.subr.mxu0 0.0
    %393 = vmatpush2.msra.mxu0 0.0
    %394 = vmatprep.mubr.f32.mxu0 0.0
    %395 = vmatmul.mubr.f32.gmra.mxu0 %v126
    %v396 = vpop.f32.mrf.mxu0
    %v397 = vadd.f32 %v247, %v396
    %v398 = vpop.f32.mrf.mxu0
    %399 = vmatprep.mubr.f32.mxu0 0.0
    %400 = vmatmul.mubr.f32.gmra.mxu0 %v129
    %v401 = vpop.f32.mrf.mxu0
    %v402 = vadd.f32 %v252, %v401
    %v403 = vpop.f32.mrf.mxu0
    %404 = vmatprep.mubr.f32.mxu0 0.0
    %405 = vmatmul.mubr.f32.gmra.mxu0 %v132
    %v406 = vpop.f32.mrf.mxu0
    %v407 = vadd.f32 %v257, %v406
    %v408 = vpop.f32.mrf.mxu0
    %409 = vmatprep.mubr.f32.mxu0 0.0
    %410 = vmatmul.mubr.f32.gmra.mxu0 %v135
    %v411 = vpop.f32.mrf.mxu0
    %v412 = vadd.f32 %v262, %v411
    %v413 = vpop.f32.mrf.mxu0
    %414 = vmatprep.mubr.f32.mxu0 0.0
    %415 = vmatmul.mubr.f32.gmra.mxu0 %v138
    %v416 = vpop.f32.mrf.mxu0
    %v417 = vadd.f32 %v267, %v416
    %v418 = vpop.f32.mrf.mxu0
    %419 = vmatprep.mubr.f32.mxu0 0.0
    %420 = vmatmul.mubr.f32.gmra.mxu0 %v141
    %v421 = vpop.f32.mrf.mxu0
    %v422 = vadd.f32 %v272, %v421
    %v423 = vpop.f32.mrf.mxu0
    %424 = vmatprep.mubr.f32.mxu0 0.0
    %425 = vmatmul.mubr.f32.gmra.mxu0 %v144
    %v426 = vpop.f32.mrf.mxu0
    %v427 = vadd.f32 %v277, %v426
    %v428 = vpop.f32.mrf.mxu0
    %429 = vmatprep.mubr.f32.mxu0 0.0
    %430 = vmatmul.mubr.f32.gmra.mxu0 %v147
    %v431 = vpop.f32.mrf.mxu0
    %v432 = vadd.f32 %v282, %v431
    %v433 = vpop.f32.mrf.mxu0
    %434 = vmatprep.mubr.f32.mxu0 0.0
    %435 = vmatmul.mubr.f32.gmra.mxu0 %v150
    %v436 = vpop.f32.mrf.mxu0
    %v437 = vadd.f32 %v287, %v436
    %v438 = vpop.f32.mrf.mxu0
    %439 = vmatprep.mubr.f32.mxu0 0.0
    %440 = vmatmul.mubr.f32.gmra.mxu0 %v153
    %v441 = vpop.f32.mrf.mxu0
    %v442 = vadd.f32 %v292, %v441
    %v443 = vpop.f32.mrf.mxu0
    %444 = vmatprep.mubr.f32.mxu0 0.0
    %445 = vmatmul.mubr.f32.gmra.mxu0 %v156
    %v446 = vpop.f32.mrf.mxu0
    %v447 = vadd.f32 %v297, %v446
    %v448 = vpop.f32.mrf.mxu0
    %449 = vmatprep.mubr.f32.mxu0 0.0
    %450 = vmatmul.mubr.f32.gmra.mxu0 %v159
    %v451 = vpop.f32.mrf.mxu0
    %v452 = vadd.f32 %v302, %v451
    %v453 = vpop.f32.mrf.mxu0
    %454 = vmatprep.mubr.f32.mxu0 0.0
    %455 = vmatmul.mubr.f32.gmra.mxu0 %v162
    %v456 = vpop.f32.mrf.mxu0
    %v457 = vadd.f32 %v307, %v456
    %v458 = vpop.f32.mrf.mxu0
    %459 = vmatprep.mubr.f32.mxu0 0.0
    %460 = vmatmul.mubr.f32.gmra.mxu0 %v165
    %v461 = vpop.f32.mrf.mxu0
    %v462 = vadd.f32 %v312, %v461
    %v463 = vpop.f32.mrf.mxu0
    %464 = vmatprep.mubr.f32.mxu0 0.0
    %465 = vmatmul.mubr.f32.gmra.mxu0 %v168
    %v466 = vpop.f32.mrf.mxu0
    %v467 = vadd.f32 %v317, %v466
    %v468 = vpop.f32.mrf.mxu0
    %469 = vmatprep.mubr.f32.mxu0 0.0
    %470 = vmatmul.mubr.f32.gmra.mxu0 %v171
    %v471 = vpop.f32.mrf.mxu0
    %v472 = vadd.f32 %v322, %v471
    %v473 = vpop.f32.mrf.mxu0
    %474 = vmatprep.mubr.f32.mxu0 0.0
    %475 = vmatmul.mubr.f32.gmra.mxu0 %v174
    %v476 = vpop.f32.mrf.mxu0
    %v477 = vadd.f32 %v327, %v476
    %v478 = vpop.f32.mrf.mxu0
    %479 = vdwg.mxu0
    %vm480 = vcmask 31744
    %481 = vst.msk [vmem:[%s3] sm:$0xff] %vm480, %v397
    %482 = vst.msk [vmem:[%s3 + $0x8] sm:$0xff] %vm480, %v402
    %483 = vst.msk [vmem:[%s3 + $0x10] sm:$0xff] %vm480, %v407
    %484 = vst.msk [vmem:[%s3 + $0x18] sm:$0xff] %vm480, %v412
    %485 = vst.msk [vmem:[%s3 + $0x20] sm:$0xff] %vm480, %v417
    %486 = vst.msk [vmem:[%s3 + $0x28] sm:$0xff] %vm480, %v422
    %487 = vst.msk [vmem:[%s3 + $0x30] sm:$0xff] %vm480, %v427
    %488 = vst.msk [vmem:[%s3 + $0x38] sm:$0xff] %vm480, %v432
    %489 = vst.msk [vmem:[%s3 + $0x40] sm:$0xff] %vm480, %v437
    %490 = vst.msk [vmem:[%s3 + $0x48] sm:$0xff] %vm480, %v442
    %491 = vst.msk [vmem:[%s3 + $0x50] sm:$0xff] %vm480, %v447
    %492 = vst.msk [vmem:[%s3 + $0x58] sm:$0xff] %vm480, %v452
    %493 = vst.msk [vmem:[%s3 + $0x60] sm:$0xff] %vm480, %v457
    %494 = vst.msk [vmem:[%s3 + $0x68] sm:$0xff] %vm480, %v462
    %495 = vst.msk [vmem:[%s3 + $0x70] sm:$0xff] %vm480, %v467
    %496 = vst.msk [vmem:[%s3 + $0x78] sm:$0xff] %vm480, %v472
    %497 = vst.msk [vmem:[%s3 + $0x80] sm:$0xff] %vm480, %v477
    // Predicated region
    $region18: #{tpu_custom_call.1} parent=1 // pred_check
      _
    $region19: #{tpu_custom_call.1} parent=1 // pred_check_branch
      %499 = sbr.rel (0) target = $region21
    $region20: #{tpu_custom_call.1} parent=1 // pred_region
      _
    $region21: #{tpu_custom_call.1} parent=1 // pred_fallthru
      _
    // Predicated region
    $region22: #{tpu_custom_call.1} parent=1 // pred_check
      _
    $region23: #{tpu_custom_call.1} parent=1 // pred_check_branch
      %501 = sbr.rel (0) target = $region25
    $region24: #{tpu_custom_call.1} parent=1 // pred_region
      _
    $region25: #{tpu_custom_call.1} parent=1 // pred_fallthru
      _
    %502 = vsyncpa [#allocation3], 1

</llo_original>
